<compile_context>
chip_gen: v7x
topology: tpu7x:2x2x1
jax: 0.10.0
libtpu: 0.0.40
codegen_flags: <defaults>
</compile_context>

<pallas_src>
import functools
import math

import numpy as np
import jax
import jax.numpy as jnp
from jax.experimental import pallas as pl
from jax.experimental.pallas import tpu as pltpu

DTYPE = jnp.bfloat16     # parameter / logits dtype (bf16 is the native TPU narrow type)
EPS = 1e-6
_VMEM_LIMIT = 48 * 1024 * 1024   # explicit scoped-VMEM budget; fits v7x's 64 MiB per TC


# ------------------------------ helpers ------------------------------------------

def _pick_block(dim, target, mult):
    """Largest block <= target that divides `dim` and is a multiple of `mult`,
    otherwise the full dimension (full dims are always legal block shapes)."""
    if dim <= target:
        return dim
    best = None
    t = mult
    while t <= target:
        if dim % t == 0:
            best = t
        t += mult
    return best if best is not None else dim


def _pick_tk(dim, target, gs):
    """K tile: multiple of lcm(group_size, 128) when possible, else the full K."""
    mult = gs * 128 // math.gcd(gs, 128)
    tk = _pick_block(dim, target, mult)
    return tk if tk % gs == 0 else dim


# ------------------------------ Pallas kernels ------------------------------------

def _qmm_kernel(x_ref, w_ref, s_ref, z_ref, b_ref, out_ref, acc_ref, *, gs, gpt):
    """out = x @ dequant(w) + bias, GPTQ per-group dequant applied to partial products.

    x:  [tm, tk] bf16      w: [tk, tn] int8 (byte - 128)
    s:  [G, tn] f32 scale  z: [G, tn] f32 (zero - 127)      b: [1, tn] f32
    """
    k_step = pl.program_id(2)

    @pl.when(k_step == 0)
    def _():
        acc_ref[...] = jnp.zeros_like(acc_ref)

    base = k_step * gpt                                   # first group of this K tile
    s_blk = s_ref[pl.ds(base, gpt), :]                    # [gpt, tn] f32 (VMEM resident)
    z_blk = z_ref[pl.ds(base, gpt), :]                    # [gpt, tn] f32

    acc = acc_ref[...]
    for t in range(gpt):                                  # static unroll over groups
        xs = x_ref[:, t * gs:(t + 1) * gs]                # [tm, gs] bf16
        ws = w_ref[t * gs:(t + 1) * gs, :].astype(jnp.bfloat16)   # [gs, tn]
        ps = jnp.dot(xs, ws, preferred_element_type=jnp.float32)  # [tm, tn] f32
        xg = jnp.sum(xs.astype(jnp.float32), axis=1, keepdims=True)  # [tm, 1]
        acc = acc + (ps - xg * z_blk[t:t + 1, :]) * s_blk[t:t + 1, :]
    acc_ref[...] = acc

    @pl.when(k_step == pl.num_programs(2) - 1)
    def _():
        out_ref[...] = (acc_ref[...] + b_ref[...]).astype(out_ref.dtype)


def _qmm_gate_kernel(x_ref, w_ref, s_ref, z_ref, b_ref, out_ref, acc_ref, *, gs, gpt):
    """Fused FFN gate: out = w1(x) * silu(w2(x)); w1/w2 stacked on the leading axis."""
    k_step = pl.program_id(2)

    @pl.when(k_step == 0)
    def _():
        acc_ref[...] = jnp.zeros_like(acc_ref)

    base = k_step * gpt
    s_blk = s_ref[:, pl.ds(base, gpt), :]                 # [2, gpt, tn] f32
    z_blk = z_ref[:, pl.ds(base, gpt), :]                 # [2, gpt, tn] f32

    a0 = acc_ref[0]
    a1 = acc_ref[1]
    for t in range(gpt):                                  # shared x tile for both branches
        xs = x_ref[:, t * gs:(t + 1) * gs]                # [tm, gs] bf16
        xg = jnp.sum(xs.astype(jnp.float32), axis=1, keepdims=True)  # [tm, 1]
        w0 = w_ref[0, t * gs:(t + 1) * gs, :].astype(jnp.bfloat16)
        p0 = jnp.dot(xs, w0, preferred_element_type=jnp.float32)
        a0 = a0 + (p0 - xg * z_blk[0, t:t + 1, :]) * s_blk[0, t:t + 1, :]
        w1 = w_ref[1, t * gs:(t + 1) * gs, :].astype(jnp.bfloat16)
        p1 = jnp.dot(xs, w1, preferred_element_type=jnp.float32)
        a1 = a1 + (p1 - xg * z_blk[1, t:t + 1, :]) * s_blk[1, t:t + 1, :]
    acc_ref[0] = a0
    acc_ref[1] = a1

    @pl.when(k_step == pl.num_programs(2) - 1)
    def _():
        h0 = acc_ref[0] + b_ref[0]                        # w1(x) + b1
        h1 = acc_ref[1] + b_ref[1]                        # w2(x) + b2
        out_ref[...] = (h0 * (h1 * jax.nn.sigmoid(h1))).astype(out_ref.dtype)


def _rmsnorm_kernel(x_ref, w_ref, out_ref):
    x = x_ref[...]
    ms = jnp.mean(x * x, axis=-1, keepdims=True)
    y = x * jax.lax.rsqrt(ms + EPS) * w_ref[...].astype(jnp.float32)
    out_ref[...] = y.astype(out_ref.dtype)


def _flash_kernel(q_ref, k_ref, v_ref, o_ref, m_sc, l_sc, acc_sc, *, scale, tq, tkv):
    """Online-softmax causal attention for one (batch, head, q-tile) over kv tiles."""
    qi = pl.program_id(2)
    ki = pl.program_id(3)

    @pl.when(ki == 0)
    def _():
        m_sc[...] = jnp.full_like(m_sc, -1e30)
        l_sc[...] = jnp.zeros_like(l_sc)
        acc_sc[...] = jnp.zeros_like(acc_sc)

    r_first = qi * tq
    r_last = r_first + tq - 1
    c_first = ki * tkv
    c_last = c_first + tkv - 1

    def scores():
        # 1/sqrt(d) folded into the (tq, D) q tile, not the (tq, tkv) score tile.
        q = (q_ref[...].astype(jnp.float32) * scale).astype(jnp.bfloat16)
        return jax.lax.dot_general(q, k_ref[...], (((1,), (1,)), ((), ())),
                                   preferred_element_type=jnp.float32)

    def update(s):
        m_prev = m_sc[...]
        m_new = jnp.maximum(m_prev, jnp.max(s, axis=-1, keepdims=True))
        alpha = jnp.exp(m_prev - m_new)
        p = jnp.exp(s - m_new)
        l_sc[...] = alpha * l_sc[...] + jnp.sum(p, axis=-1, keepdims=True)
        acc_sc[...] = alpha * acc_sc[...] + jnp.dot(p.astype(jnp.bfloat16), v_ref[...],
                                                    preferred_element_type=jnp.float32)
        m_sc[...] = m_new

    # KV tile fully at-or-below the diagonal: no mask work at all.
    @pl.when(c_last <= r_first)
    def _():
        update(scores())

    # KV tile straddles the diagonal: build and apply the causal mask.
    @pl.when(jnp.logical_and(c_last > r_first, c_first <= r_last))
    def _():
        s = scores()
        row = r_first + jax.lax.broadcasted_iota(jnp.int32, (tq, tkv), 0)
        col = c_first + jax.lax.broadcasted_iota(jnp.int32, (tq, tkv), 1)
        update(jnp.where(col <= row, s, -1e30))

    # (fully-masked tiles fall through: m/l/acc untouched, DMA clamped in the index_map)

    @pl.when(ki == pl.num_programs(3) - 1)
    def _():
        inv = pl.reciprocal(l_sc[...], approx=True)
        o_ref[...] = (acc_sc[...] * inv).astype(o_ref.dtype)


def _matmul_kernel(x_ref, w_ref, out_ref, acc_ref):
    # out = x @ w   (lm_head, weight pre-transposed to [H, V] at init)
    @pl.when(pl.program_id(2) == 0)
    def _():
        acc_ref[...] = jnp.zeros_like(acc_ref)
    acc_ref[...] += jnp.dot(x_ref[...], w_ref[...], preferred_element_type=jnp.float32)

    @pl.when(pl.program_id(2) == pl.num_programs(2) - 1)
    def _():
        out_ref[...] = acc_ref[...].astype(out_ref.dtype)


# ------------------------------ wrappers -------------------------------------------

def qmm(x, p, out_dtype=jnp.float32):
    """x: [M, K] bf16, p: prepared QLinear params -> [M, N] out_dtype."""
    M, K = x.shape
    N = p["w_i8"].shape[1]
    G = p["scale_g"].shape[0]
    gs = p["group_size"]

    tm = _pick_block(M, 512, 8)
    tn = _pick_block(N, 512, 128)
    tk = _pick_tk(K, 512, gs)
    gpt = tk // gs
    grid = (M // tm, N // tn, K // tk)
    kern = functools.partial(_qmm_kernel, gs=gs, gpt=gpt)
    return pl.pallas_call(
        kern,
        out_shape=jax.ShapeDtypeStruct((M, N), out_dtype),
        grid=grid,
        in_specs=[
            pl.BlockSpec((tm, tk), lambda i, j, k: (i, k)),      # x      bf16
            pl.BlockSpec((tk, tn), lambda i, j, k: (k, j)),      # w_i8   int8 (1 B/wt)
            pl.BlockSpec((G, tn), lambda i, j, k: (0, j)),       # scale  f32 (resident)
            pl.BlockSpec((G, tn), lambda i, j, k: (0, j)),       # zero-127 f32 (resident)
            pl.BlockSpec((1, tn), lambda i, j, k: (0, j)),       # bias   f32
        ],
        out_specs=pl.BlockSpec((tm, tn), lambda i, j, k: (i, j)),
        scratch_shapes=[pltpu.VMEM((tm, tn), jnp.float32)],
        compiler_params=pltpu.CompilerParams(
            dimension_semantics=("parallel", "parallel", "arbitrary"),
            vmem_limit_bytes=_VMEM_LIMIT),
    )(x, p["w_i8"], p["scale_g"], p["zero_c"], p["bias"])


def qmm_gate(x, p):
    """Fused FFN gate: returns w1(x) * silu(w2(x)) in bf16.  x: [M, K] bf16."""
    M, K = x.shape
    N = p["w_i8"].shape[2]
    G = p["scale_g"].shape[1]
    gs = p["group_size"]

    tm = _pick_block(M, 512, 8)
    tn = _pick_block(N, 512, 128)
    tk = _pick_tk(K, 512, gs)
    gpt = tk // gs
    grid = (M // tm, N // tn, K // tk)
    kern = functools.partial(_qmm_gate_kernel, gs=gs, gpt=gpt)
    return pl.pallas_call(
        kern,
        out_shape=jax.ShapeDtypeStruct((M, N), jnp.bfloat16),
        grid=grid,
        in_specs=[
            pl.BlockSpec((tm, tk), lambda i, j, k: (i, k)),
            pl.BlockSpec((2, tk, tn), lambda i, j, k: (0, k, j)),
            pl.BlockSpec((2, G, tn), lambda i, j, k: (0, 0, j)),
            pl.BlockSpec((2, G, tn), lambda i, j, k: (0, 0, j)),
            pl.BlockSpec((2, 1, tn), lambda i, j, k: (0, 0, j)),
        ],
        out_specs=pl.BlockSpec((tm, tn), lambda i, j, k: (i, j)),
        scratch_shapes=[pltpu.VMEM((2, tm, tn), jnp.float32)],
        compiler_params=pltpu.CompilerParams(
            dimension_semantics=("parallel", "parallel", "arbitrary"),
            vmem_limit_bytes=_VMEM_LIMIT),
    )(x, p["w_i8"], p["scale_g"], p["zero_c"], p["bias"])


def rms_norm(x, weight):
    """x: [..., H] f32 residual, weight: [H] bf16 -> bf16 (feeds matmuls)."""
    H = x.shape[-1]
    x2 = x.reshape(-1, H)
    M = x2.shape[0]
    bm = _pick_block(M, 512, 8)
    out = pl.pallas_call(
        _rmsnorm_kernel,
        out_shape=jax.ShapeDtypeStruct((M, H), jnp.bfloat16),
        grid=(M // bm,),
        in_specs=[pl.BlockSpec((bm, H), lambda i: (i, 0)),
                  pl.BlockSpec((1, H), lambda i: (0, 0))],
        out_specs=pl.BlockSpec((bm, H), lambda i: (i, 0)),
        compiler_params=pltpu.CompilerParams(dimension_semantics=("parallel",)),
    )(x2, weight.reshape(1, H))
    return out.reshape(x.shape)


def flash_attention(q, k, v, nr_groups, head_size):
    """q: [B, NH, S, D] bf16; k, v: [B, NKV, S, D] bf16 (GQA handled in the index_map)."""
    B, NH, S, D = q.shape
    NG = nr_groups
    tq = _pick_block(S, 256, 128)
    tkv = _pick_block(S, 128, 128)          # smaller kv tile: halves vreg pressure
    kern = functools.partial(_flash_kernel, scale=1.0 / math.sqrt(head_size),
                             tq=tq, tkv=tkv)

    def kv_index(b, h, qi, ki):
        # Clamp fully-masked KV tiles to the last causally-needed tile: the block index
        # repeats, so Pallas keeps the resident block and skips the wasted DMA.
        last = ((qi + 1) * tq - 1) // tkv
        return (b, h // NG, jnp.minimum(ki, last), 0)

    q_spec = pl.BlockSpec((None, None, tq, D), lambda b, h, qi, ki: (b, h, qi, 0))
    kv_spec = pl.BlockSpec((None, None, tkv, D), kv_index)
    o_spec = pl.BlockSpec((None, None, tq, D), lambda b, h, qi, ki: (b, h, qi, 0))
    return pl.pallas_call(
        kern,
        out_shape=jax.ShapeDtypeStruct((B, NH, S, D), jnp.bfloat16),
        grid=(B, NH, S // tq, S // tkv),
        in_specs=[q_spec, kv_spec, kv_spec],
        out_specs=o_spec,
        scratch_shapes=[pltpu.VMEM((tq, 1), jnp.float32),
                        pltpu.VMEM((tq, 1), jnp.float32),
                        pltpu.VMEM((tq, D), jnp.float32)],
        compiler_params=pltpu.CompilerParams(
            dimension_semantics=("parallel", "parallel", "parallel", "arbitrary")),
    )(q, k, v)


def matmul(x, w):
    """x: [M, H] bf16 @ w: [H, V] bf16 -> [M, V] DTYPE (lm_head, pre-transposed weight)."""
    M, H = x.shape
    V = w.shape[1]
    tm = _pick_block(M, 1024, 8)
    tv = _pick_block(V, 512, 128)
    th = _pick_block(H, 512, 128)
    grid = (M // tm, V // tv, H // th)
    return pl.pallas_call(
        _matmul_kernel,
        out_shape=jax.ShapeDtypeStruct((M, V), DTYPE),
        grid=grid,
        in_specs=[pl.BlockSpec((tm, th), lambda i, j, k: (i, k)),
                  pl.BlockSpec((th, tv), lambda i, j, k: (k, j))],
        out_specs=pl.BlockSpec((tm, tv), lambda i, j, k: (i, j)),
        scratch_shapes=[pltpu.VMEM((tm, tv), jnp.float32)],
        compiler_params=pltpu.CompilerParams(
            dimension_semantics=("parallel", "parallel", "arbitrary"),
            vmem_limit_bytes=_VMEM_LIMIT),
    )(x, w)


# ------------------------------ model pieces (XLA glue) -----------------------------

def precompute_freqs(dim, size, theta):
    exponents = np.arange(0, dim // 2, dtype=np.float32) * (2.0 / dim)
    freqs = 1.0 / (theta ** exponents)
    t = np.arange(size, dtype=np.float32)
    f = np.outer(t, freqs)
    return (jnp.asarray(np.cos(f), dtype=DTYPE),
            jnp.asarray(np.sin(f), dtype=DTYPE))


def apply_rope(x, cos, sin):
    # TODO(synk): upstream `rope` impl not shown; assuming interleaved-pair (llama)
    # convention.  TODO(synk): fuse RoPE into a Pallas pre-kernel (pltpu.roll) to avoid
    # the XLA strided-slice round trip.
    xr = x[..., 0::2]
    xi = x[..., 1::2]
    c = cos[None, :, None, :].astype(jnp.float32)
    s = sin[None, :, None, :].astype(jnp.float32)
    out_r = xr * c - xi * s
    out_i = xr * s + xi * c
    return jnp.stack([out_r, out_i], axis=-1).reshape(x.shape)


def attention_forward(xn, p, cos, sin, nr_querys, nr_groups, head_size):
    """xn: [B, S, H] bf16 (already RMS-normed)."""
    B, S, H = xn.shape
    nr_kv = nr_querys // nr_groups
    # c_attn output in bf16: it is consumed in bf16 by RoPE / attention anyway.
    qkv = qmm(xn.reshape(B * S, H), p["c_attn"], out_dtype=jnp.bfloat16).reshape(B, S, -1)
    q_sz = nr_querys * head_size
    kv_sz = nr_kv * head_size
    q = qkv[..., :q_sz].reshape(B, S, nr_querys, head_size)
    k = qkv[..., q_sz:q_sz + kv_sz].reshape(B, S, nr_kv, head_size)
    v = qkv[..., q_sz + kv_sz:].reshape(B, S, nr_kv, head_size)
    q = apply_rope(q, cos, sin)
    k = apply_rope(k, cos, sin)
    # TODO(synk): keep [B, S, NH, D] layout and index heads via BlockSpec to drop these
    # transpose copies.
    q = q.transpose(0, 2, 1, 3).astype(jnp.bfloat16)        # [B, NH,  S, D]
    k = k.transpose(0, 2, 1, 3).astype(jnp.bfloat16)        # [B, NKV, S, D]  (no repeat)
    v = v.transpose(0, 2, 1, 3).astype(jnp.bfloat16)
    o = flash_attention(q, k, v, nr_groups, head_size)      # [B, NH, S, D] bf16
    o = o.transpose(0, 2, 1, 3).reshape(B * S, nr_querys * head_size)
    return qmm(o, p["c_proj"], out_dtype=jnp.float32).reshape(B, S, H)


def ffn_forward(xn, p):
    """xn: [B, S, H] bf16 (already RMS-normed)."""
    B, S, H = xn.shape
    x2 = xn.reshape(B * S, H)
    g = qmm_gate(x2, p["w12"])                               # w1(x) * silu(w2(x)), bf16
    out = qmm(g, p["c_proj"], out_dtype=jnp.float32)
    return out.reshape(B, S, H)


def block_forward(x, p, cos, sin, cfg):
    a = x + attention_forward(rms_norm(x, p["ln_1"]), p["attn"], cos, sin,
                              cfg["nr_querys"], cfg["nr_groups"], cfg["head_size"])
    f = ffn_forward(rms_norm(a, p["ln_2"]), p["mlp"])
    return a + f


def llama2_forward(params, input_ids, cfg):
    B, S = input_ids.shape
    states = params["wte"][input_ids].astype(jnp.float32)    # embedding lookup (glue)
    cos = params["freqs_cos"][:S]
    sin = params["freqs_sin"][:S]
    for lp in params["layers"]:
        states = block_forward(states, lp, cos, sin, cfg)
    states_n = rms_norm(states, params["ln_f"])               # bf16
    logits = matmul(states_n.reshape(B * S, -1), params["lm_head_t"])
    return logits.reshape(B, S, -1)


# ------------------------------ deterministic init / weight prep --------------------

def _pack_bytes_rows(b):      # pack 4 consecutive rows' bytes into one int32 row
    b = b.astype(np.uint32)
    p = b[0::4] | (b[1::4] << 8) | (b[2::4] << 16) | (b[3::4] << 24)
    return np.ascontiguousarray(p).view(np.int32)


def _pack_bytes_cols(b):      # pack 4 consecutive cols' bytes into one int32 col
    b = b.astype(np.uint32)
    p = b[:, 0::4] | (b[:, 1::4] << 8) | (b[:, 2::4] << 16) | (b[:, 3::4] << 24)
    return np.ascontiguousarray(p).view(np.int32)


def _prep_qlinear(qweight, qzeros, scales, g_idx, bias):
    """One-time (init) conversion of GPTQ buffers to the kernel-friendly layout.

    w = (byte - (zero+1)) * scale
      = [ (byte-128)  -  (zero-127) ] * scale          (byte-128 stored as int8)
    so per group g:   out += ( x_g @ (byte-128)_g  -  sum(x_g) * (zero_g-127) ) * scale_g
    Requires the standard GPTQ layout: uniform, contiguous groups (no act-order).
    """
    qw = np.asarray(qweight).astype(np.uint32)                        # [K//4, N]
    K4, N = qw.shape
    bytes_k = np.stack([(qw >> (8 * j)) & 0xFF for j in range(4)],
                       axis=1).reshape(K4 * 4, N)                     # [K, N] in [0,255]
    w_i8 = (bytes_k.astype(np.int32) - 128).astype(np.int8)

    qz = np.asarray(qzeros).astype(np.uint32)                         # [Gbuf, N//4]
    zeros = np.stack([(qz >> (8 * j)) & 0xFF for j in range(4)],
                     axis=-1).reshape(qz.shape[0], N).astype(np.float32)   # [Gbuf, N]
    scales_f = np.asarray(scales).astype(np.float32)                  # [Gbuf, N]
    gidx = np.asarray(g_idx).astype(np.int64)                         # [K]
    K = gidx.shape[0]

    counts = np.bincount(gidx)
    used = np.flatnonzero(counts)
    sizes = np.unique(counts[used])
    # TODO(synk): non-uniform / act-order g_idx needs a per-row scale fallback path.
    assert sizes.size == 1, "non-uniform GPTQ groups not supported by the fast path"
    gs = int(sizes[0])
    assert K % gs == 0
    chunk_ids = gidx[::gs]
    assert np.array_equal(gidx, np.repeat(chunk_ids, gs)), "groups must be contiguous"

    scale_g = scales_f[chunk_ids]                                     # [G, N]
    zero_g = zeros[chunk_ids]                                         # [G, N]

    return dict(
        w_i8=jnp.asarray(w_i8),                                       # [K, N] int8
        scale_g=jnp.asarray(scale_g, dtype=jnp.float32),              # [G, N] f32
        zero_c=jnp.asarray(zero_g - 127.0, dtype=jnp.float32),        # [G, N] f32
        bias=jnp.asarray(np.asarray(bias), dtype=jnp.float32).reshape(1, N),
        group_size=gs,
    )


def _stack_pair(p1, p2):
    assert p1["group_size"] == p2["group_size"]
    out = {k: jnp.stack([p1[k], p2[k]], axis=0) for k in p1 if k != "group_size"}
    out["group_size"] = p1["group_size"]
    return out


def init_qlinear(key, in_f, out_f, n_qgroups):
    k1, k2, k3, k4 = jax.random.split(key, 4)
    # Effective uniform group layout (standard GPTQ).  Buffers keep the spec'd
    # (n_qgroups, ...) shapes; only the rows referenced by g_idx are used.
    n_used = n_qgroups if in_f % n_qgroups == 0 else math.gcd(in_f, n_qgroups)
    group_size = in_f // n_used
    g_idx = np.arange(in_f) // group_size
    wbytes = np.asarray(jax.random.randint(k1, (in_f, out_f), 0, 256, dtype=jnp.int32))
    zbytes = np.asarray(jax.random.randint(k2, (n_qgroups, out_f), 96, 160, dtype=jnp.int32))
    qweight = _pack_bytes_rows(wbytes)                                # (in_f//4, out_f)
    qzeros = _pack_bytes_cols(zbytes)                                 # (G, out_f//4)
    scales = np.asarray(jax.random.uniform(k3, (n_qgroups, out_f), jnp.float32, 0.005, 0.02))
    bias = np.asarray(jax.random.normal(k4, (out_f,), jnp.float32)) * 0.01
    return _prep_qlinear(qweight, qzeros, scales, g_idx, bias)


def init_model(key, cfg):
    emb, L, H = cfg["embedding_size"], cfg["nr_layers"], cfg["hidden_size"]
    nq, ng, d, inner = cfg["nr_querys"], cfg["nr_groups"], cfg["head_size"], cfg["internal_size"]
    nkv = nq // ng * 2
    qdim = nq * d + nkv * d
    keys = jax.random.split(key, 3 + L)
    lm_w = (jax.random.normal(keys[1], (emb, H), jnp.float32) * 0.02).astype(DTYPE)  # [V, H]
    params = {
        "wte": (jax.random.normal(keys[0], (emb, H), jnp.float32) * 0.02).astype(DTYPE),
        "lm_head_t": jnp.asarray(lm_w.T),   # pre-transposed [H, V] once at init
        "ln_f": (1.0 + 0.01 * jax.random.normal(keys[2], (H,), jnp.float32)).astype(DTYPE),
    }
    params["freqs_cos"], params["freqs_sin"] = precompute_freqs(d, 1024, 100000.0)
    layers = []
    for li in range(L):
        lk = jax.random.split(keys[3 + li], 7)
        w1 = init_qlinear(lk[4], H, inner, 40)
        w2 = init_qlinear(lk[5], H, inner, 40)
        layers.append({
            "ln_1": (1.0 + 0.01 * jax.random.normal(lk[0], (H,), jnp.float32)).astype(DTYPE),
            "ln_2": (1.0 + 0.01 * jax.random.normal(lk[1], (H,), jnp.float32)).astype(DTYPE),
            "attn": {
                "c_attn": init_qlinear(lk[2], H, qdim, 40),
                "c_proj": init_qlinear(lk[3], nq * d, H, 40),
            },
            "mlp": {
                "w12": _stack_pair(w1, w2),
                "c_proj": init_qlinear(lk[6], inner, H, 107),
            },
        })
    params["layers"] = layers
    return params


# ----------------------------------- main ------------------------------------------

if __name__ == "__main__":
    cfg = dict(embedding_size=64, nr_layers=2, hidden_size=32,
               nr_querys=4, nr_groups=2, head_size=8, internal_size=64)
    key = jax.random.PRNGKey(0)
    pkey, ikey = jax.random.split(key)
    params = init_model(pkey, cfg)

    B, S = 2, 8
    input_ids = jax.random.randint(ikey, (B, S), 0, cfg["embedding_size"], dtype=jnp.int32)

    logits = llama2_forward(params, input_ids, cfg)
    logits = jax.block_until_ready(logits)

    assert logits.shape == (B, S, cfg["embedding_size"])
    assert logits.dtype == DTYPE
    assert bool(jnp.all(jnp.isfinite(logits.astype(jnp.float32))))
    print("KERNEL_OK")
</pallas_src>

<mosaic_0001>
module attributes {stable_mosaic.version = 11 : i64} {
  func.func @_rmsnorm_kernel(%arg0: i32, %arg1: memref<16x32xf32, #tpu.memory_space<vmem>>, %arg2: memref<1x32xbf16, #tpu.memory_space<vmem>>, %arg3: memref<16x32xbf16, #tpu.memory_space<vmem>>) attributes {dimension_semantics = [#tpu.dimension_semantics<parallel>], iteration_bounds = array<i64: 1>, scalar_prefetch = 0 : i64, scratch_operands = 0 : i64, tpu.core_type = #tpu.core_type<tc>, window_params = [{transform_indices = @transform_0, window_bounds = array<i64: 16, 32>}, {pipeline_mode = #tpu.pipeline_mode<synchronous>, transform_indices = @transform_1, window_bounds = array<i64: 1, 32>}, {transform_indices = @transform_2, window_bounds = array<i64: 16, 32>}]} {
    %c0 = arith.constant 0 : index
    %c0_0 = arith.constant 0 : index
    %0 = vector.load %arg1[%c0, %c0_0] : memref<16x32xf32, #tpu.memory_space<vmem>>, vector<16x32xf32>
    %1 = arith.mulf %0, %0 : vector<16x32xf32>
    %cst = arith.constant dense<0.000000e+00> : vector<16xf32>
    %2 = vector.multi_reduction <add>, %1, %cst [1] : vector<16x32xf32> to vector<16xf32>
    %3 = vector.shape_cast %2 : vector<16xf32> to vector<16x1xf32>
    %cst_1 = arith.constant 3.200000e+01 : f32
    %4 = vector.broadcast %cst_1 : f32 to vector<16x1xf32>
    %5 = arith.divf %3, %4 : vector<16x1xf32>
    %cst_2 = arith.constant 9.99999997E-7 : f32
    %6 = vector.broadcast %cst_2 : f32 to vector<16x1xf32>
    %7 = arith.addf %5, %6 : vector<16x1xf32>
    %8 = math.rsqrt %7 : vector<16x1xf32>
    %9 = vector.broadcast %8 : vector<16x1xf32> to vector<16x32xf32>
    %10 = arith.mulf %0, %9 : vector<16x32xf32>
    %c0_3 = arith.constant 0 : index
    %c0_4 = arith.constant 0 : index
    %11 = vector.load %arg2[%c0_3, %c0_4] : memref<1x32xbf16, #tpu.memory_space<vmem>>, vector<1x32xbf16>
    %12 = arith.extf %11 : vector<1x32xbf16> to vector<1x32xf32>
    %13 = vector.broadcast %12 : vector<1x32xf32> to vector<16x32xf32>
    %14 = arith.mulf %10, %13 : vector<16x32xf32>
    %15 = arith.truncf %14 : vector<16x32xf32> to vector<16x32xbf16>
    %c0_5 = arith.constant 0 : index
    %c0_6 = arith.constant 0 : index
    %16 = vector.load %arg3[%c0_5, %c0_6] : memref<16x32xbf16, #tpu.memory_space<vmem>>, vector<16x32xbf16>
    tpu.vector_store %arg3[%c0_5, %c0_6], %15 {strides = array<i32>} : memref<16x32xbf16, #tpu.memory_space<vmem>>, vector<16x32xbf16>,
    return
  }
  func.func @transform_0(%arg0: i32) -> (i32, i32) {
    %c0_i32 = arith.constant 0 : i32
    %c0_i32_0 = arith.constant 0 : i32
    return %arg0, %c0_i32 : i32, i32
  }
  func.func @transform_1(%arg0: i32) -> (i32, i32) {
    %c0_i32 = arith.constant 0 : i32
    %c0_i32_0 = arith.constant 0 : i32
    %c0_i32_1 = arith.constant 0 : i32
    return %c0_i32, %c0_i32_0 : i32, i32
  }
  func.func @transform_2(%arg0: i32) -> (i32, i32) {
    %c0_i32 = arith.constant 0 : i32
    %c0_i32_0 = arith.constant 0 : i32
    return %arg0, %c0_i32 : i32, i32
  }
}

</mosaic_0001>

<llo_original>
// kernel: tpu_custom_call.1
$region0: #{tpu_custom_call.1}
  #allocation0 [shape = 'u32[]', space=smem, size = 0x4, offset = 0x4, fixed_abs, tag = 'smem constant byte address 0x4 - core index']
  #allocation1 [shape = 'u32[144,128]{1,0:T(1,128)}', space=vmem, size = 0x12000, scoped, tag = 'internal scratch']
  %s0 = inlined_call_operand.hbm [shape: f32[16,32], index: 0, kind: input, shape index: {}]
  %s1 = inlined_call_operand.vmem [shape: bf16[1,32], index: 1, kind: input, shape index: {}]
  %s2 = inlined_call_operand.hbm [shape: bf16[16,32], index: 2, kind: output, shape index: {}]
  %s3 = sld [smem:[#allocation0]]
  $region22: #{tpu_custom_call.1} parent=0
    _
  %s5 = ssub.s32 1, %s3
  %s6 = scalar_select 0, %s5, %s3
  $region1: #{tpu_custom_call.1} parent=0
    #allocation2 [shape = 'u8[8192]{0}', space=vmem, size = 0x2000, scoped, tag = 'input window, operand 0, single buffered']
    #allocation3 [shape = 's32[1]{0}', space=sflag, size = 0x4, scoped, tag = 'scoped memory for tpu_custom_call.1']
    #allocation4 [shape = 's32[1]{0}', space=sflag, size = 0x4, scoped, tag = 'scoped memory for tpu_custom_call.1']
    #allocation5 [shape = 'u8[4096]{0}', space=vmem, size = 0x1000, scoped, tag = 'output window, operand 0, single buffered']
    %7 = vsyncpa [#allocation3], 0
    %8 = vsyncpa [#allocation4], 0
    // Predicated region
    $region2: #{tpu_custom_call.1} parent=1 // pred_check
      _
    $region3: #{tpu_custom_call.1} parent=1 // pred_check_branch
      %10 = sbr.rel (0) target = $region5
    $region4: #{tpu_custom_call.1} parent=1 // pred_region
      %s12 = ssub.s32 256, 256
      %13 = vsyncadd [#allocation3], %s12
      %s14 = sshll.u32 [#allocation2], 4
      %s15 = int_to_ptr.vmem [resolvable:$true] %s14
      %20 = dma.hbm_to_vmem [thread:$0]  %s0, 256, %s15, [#allocation3], 128, 128, 8
    $region5: #{tpu_custom_call.1} parent=1 // pred_fallthru
      _
    // Predicated region
    $region6: #{tpu_custom_call.1} parent=1 // pred_check
      _
    $region7: #{tpu_custom_call.1} parent=1 // pred_check_branch
      %22 = sbr.rel (0) target = $region9
    $region8: #{tpu_custom_call.1} parent=1 // pred_region
      _
    $region9: #{tpu_custom_call.1} parent=1 // pred_fallthru
      _
    // Predicated region
    $region10: #{tpu_custom_call.1} parent=1 // pred_check
      _
    $region11: #{tpu_custom_call.1} parent=1 // pred_check_branch
      %24 = sbr.rel (0) target = $region13
    $region12: #{tpu_custom_call.1} parent=1 // pred_region
      %25 = dma.done [#allocation3], 256
    $region13: #{tpu_custom_call.1} parent=1 // pred_fallthru
      _
    %v26 = vld [vmem:[#allocation2] sm:$0xff]
    %v27 = vld [vmem:[#allocation2 + $0x8] sm:$0xff]
    %v28 = vmul.f32 %v26, %v26
    %v29 = vmul.f32 %v27, %v27
    %vm30 = vcmask 261120
    %v31 = vsel %vm30, %v28, 0.0
    %32 = vadd.xlane.f32.xlu0 %v31
    %v33 = vpop.xlane.xlu0 %32
    %v34 = vsel %vm30, %v29, 0.0
    %35 = vadd.xlane.f32.xlu0 %v34
    %v36 = vpop.xlane.xlu0 %35
    %v37 = vrcp.pop 32.0
    %v38 = vmul.f32 %v33, %v37
    %v39 = vmul.f32 %v36, %v37
    %v40 = vadd.f32 %v38, 1e-06
    %v41 = vadd.f32 %v39, 1e-06
    %v42 = vrsqrt.pop %v40
    %v43 = vrsqrt.pop %v41
    %v44 = vmul.f32 %v26, %v42
    %v45 = vmul.f32 %v27, %v43
    %v46 = vld [vmem:[%s1] sm:$0x1]
    %v47 = vunpack.c.l.bf16 %v46
    %v48 = vlaneseq
    %v49 = vshrl.u32 %v48, 7
    %v50 = vsub.s32 0, %v49
    %v51 = vrot.slane %v47, %v50
    %v52 = vmul.f32 %v44, %v51
    %v53 = vmul.f32 %v45, %v51
    %v54 = vpack.c.bf16 %v53, %v52
    %v56 = vunpack.c.l.b16 %v54
    %v57 = vunpack.c.h.b16 %v54
    %v58 = vpack.c.b16 %v56, %v56
    %v59 = vpack.c.b16 %v57, %v57
    %vm62 = vcmask 257024
    %63 = vst.msk [vmem:[#allocation5] sm:$0xf] %vm62, %v58
    %64 = vst.msk [vmem:[#allocation5 + $0x4] sm:$0xf] %vm62, %v59
    // Predicated region
    $region14: #{tpu_custom_call.1} parent=1 // pred_check
      _
    $region15: #{tpu_custom_call.1} parent=1 // pred_check_branch
      %66 = sbr.rel (0) target = $region17
    $region16: #{tpu_custom_call.1} parent=1 // pred_region
      %s68 = ssub.s32 128, 128
      %69 = vsyncadd [#allocation4], %s68
      %s70 = sshll.u32 [#allocation5], 4
      %s71 = int_to_ptr.vmem [resolvable:$true] %s70
      %76 = dma.vmem_to_hbm [thread:$0]  %s71, 128, %s2, [#allocation4], 64, 64, 4
    $region17: #{tpu_custom_call.1} parent=1 // pred_fallthru
      _
    // Predicated region
    $region18: #{tpu_custom_call.1} parent=1 // pred_check
      _
    $region19: #{tpu_custom_call.1} parent=1 // pred_check_branch
      %78 = sbr.rel (0) target = $region21
    $region20: #{tpu_custom_call.1} parent=1 // pred_region
      %79 = dma.done [#allocation4], 128
    $region21: #{tpu_custom_call.1} parent=1 // pred_fallthru
      _
    %80 = vsyncpa [#allocation3], 1
    %81 = vsyncpa [#allocation4], 1

</llo_original>
